<compile_context>
chip_gen: v6e
topology: v6e:2x2x1
jax: 0.10.0
libtpu: 0.0.40
codegen_flags: <defaults>
</compile_context>

<pallas_src>
import jax
import jax.numpy as jnp
from jax import lax
from jax.experimental import pallas as pl
from jax.experimental.pallas import tpu as pltpu


# ---------------------------------------------------------------------------
# kernel 1: tiled per-(n, c) batch statistics (sum and sum-of-squares) over the
# lane-dense (N*Cin, H*W) view of the NCHW input.
# grid = (row_blocks [parallel], col_blocks [arbitrary / accumulated])
# ---------------------------------------------------------------------------
def bn_stats_kernel(x_ref, sum_ref, sq_ref):
    @pl.when(pl.program_id(1) == 0)
    def _():
        sum_ref[...] = jnp.zeros_like(sum_ref)
        sq_ref[...] = jnp.zeros_like(sq_ref)

    x = x_ref[...]                                   # (tr, tc) f32
    sum_ref[...] += jnp.sum(x, axis=1, keepdims=True)
    sq_ref[...] += jnp.sum(x * x, axis=1, keepdims=True)


def _pick_tile(total, preferred, align):
    """Largest multiple of `align` dividing `total` and <= `preferred`;
    falls back to `total` (a full-extent block is always legal)."""
    t = (min(preferred, total) // align) * align
    while t >= align:
        if total % t == 0:
            return t
        t -= align
    return total


# ---------------------------------------------------------------------------
# kernel 2 factory: fused BN(scale/shift) + ReLU + 3x3 conv on one row block.
# ---------------------------------------------------------------------------
def _make_fused_kernel(Cin, W, th, Hb):
    thW = th * W                 # valid output elements per row block
    L = (th + 2) * W + 2         # flat window: 1 guard + (th+2) rows + 1 guard
    W1 = 1 + W                   # flat offset of the main-body rows
    BOT = 1 + (th + 1) * W       # flat offset of the bottom halo row
    m_align = thW & -thW         # pow2 divisor of the main-DMA start
    w_align = W & -W             # pow2 divisor of the halo-DMA starts

    def kernel(scale_ref, shift_ref, w_ref, x_hbm, out_ref,
               win_ref, act_ref, p_ref, sem):
        n = pl.program_id(0)
        i = pl.program_id(1)
        slot = lax.rem(i, 2)
        nslot = 1 - slot

        # ---- manual, double-buffered window DMAs (no wrapper-side padding) --
        def window_copies(i_, slot_):
            main = pltpu.make_async_copy(
                x_hbm.at[n, :, pl.ds(pl.multiple_of(i_ * thW, m_align), thW)],
                win_ref.at[slot_, :, pl.ds(W1, thW)],
                sem.at[slot_, 0])
            top = pltpu.make_async_copy(
                x_hbm.at[n, :, pl.ds(pl.multiple_of((i_ * th - 1) * W,
                                                    w_align), W)],
                win_ref.at[slot_, :, pl.ds(1, W)],
                sem.at[slot_, 1])
            bot = pltpu.make_async_copy(
                x_hbm.at[n, :, pl.ds(pl.multiple_of((i_ * th + th) * W,
                                                    w_align), W)],
                win_ref.at[slot_, :, pl.ds(BOT, W)],
                sem.at[slot_, 2])
            return main, top, bot

        def start_window(i_, slot_):
            main, top, bot = window_copies(i_, slot_)
            main.start()

            @pl.when(i_ > 0)              # top halo row exists in the image
            def _():
                top.start()

            @pl.when(i_ < Hb - 1)         # bottom halo row exists in the image
            def _():
                bot.start()

        def wait_window(i_, slot_):
            main, top, bot = window_copies(i_, slot_)
            main.wait()

            @pl.when(i_ > 0)
            def _():
                top.wait()

            @pl.when(i_ < Hb - 1)
            def _():
                bot.wait()

        # Prime at the first row block of each image (row blocks of one image
        # run in order on the same core: Hb axis is "arbitrary").
        @pl.when(i == 0)
        def _():
            start_window(i, slot)

        # Wait for the current window, then prefetch the next row block of the
        # same image into the other slot; the prefetch overlaps the compute.
        wait_window(i, slot)

        @pl.when(i + 1 < Hb)
        def _():
            start_window(i + 1, nslot)

        # ---- fused BatchNorm + ReLU (+ zeroing of the conv pad rows) --------
        v = win_ref[slot]                                   # (Cin, L) f32
        a = jnp.maximum(v * scale_ref[...] + shift_ref[...], 0.0)
        e = lax.broadcasted_iota(jnp.int32, (1, L), 1)
        top_pad = (e < W1) & (i == 0)                       # halo row is zero-pad
        bot_pad = (e >= BOT) & (i == Hb - 1)
        valid = jnp.logical_not(top_pad | bot_pad)
        act_ref[...] = jnp.where(valid, a, 0.0).astype(act_ref.dtype)

        # ---- stacked im2col patch matrix (9*Cin, th*W) ----------------------
        xpos = lax.broadcasted_iota(jnp.int32, (1, thW), 1) % W
        not_left = xpos > 0          # tap samples column x-1 -> invalid at x==0
        not_right = xpos < W - 1     # tap samples column x+1 -> invalid at x==W-1
        zero = jnp.zeros((), act_ref.dtype)
        for t in range(9):
            dy, dx = divmod(t, 3)
            s = dy * W + dx          # static offset into the flat window
            patch = act_ref[:, s:s + thW]                   # (Cin, thW)
            if dx == 0:
                patch = jnp.where(not_left, patch, zero)
            elif dx == 2:
                patch = jnp.where(not_right, patch, zero)
            p_ref[t * Cin:(t + 1) * Cin, :] = patch

        # ---- single MXU matmul: (Cout, 9*Cin) @ (9*Cin, th*W), f32 acc ------
        out_ref[0] = jnp.dot(w_ref[...], p_ref[...],
                             preferred_element_type=jnp.float32
                             ).astype(out_ref.dtype)

    return kernel


# ---------------------------------------------------------------------------
# wrapper: BN(batch stats) -> ReLU -> Conv2d(3x3, stride 1, pad 1, no bias)
# ---------------------------------------------------------------------------
def basic_conv_forward(x_nchw, weight_oihw, gamma, beta, eps=1e-5,
                       row_block=None, mxu_dtype=jnp.bfloat16):
    N, Cin, H, W = x_nchw.shape
    Cout, Cin_w, Kh, Kw = weight_oihw.shape
    assert Cin_w == Cin and (Kh, Kw) == (3, 3)
    x_nchw = x_nchw.astype(jnp.float32)

    # VMEM budget adapted per generation (v5e/v6e: 128 MiB, v7x: 64 MiB).
    try:
        info = pltpu.get_tpu_info()
        vmem_cap = int(getattr(info, "vmem_capacity_bytes", 64 * 1024 * 1024))
    except Exception:
        vmem_cap = 64 * 1024 * 1024
    vmem_limit = max(32 * 1024 * 1024,
                     min(vmem_cap * 3 // 4, 100 * 1024 * 1024))

    # ----------------- kernel 1: batch statistics (tiled) ------------------
    NC, HW = N * Cin, H * W
    xr = x_nchw.reshape(NC, HW)                      # free view of NCHW
    tr = _pick_tile(NC, 256, 8)
    tc = _pick_tile(HW, 4096, 128)

    row_sum, row_sq = pl.pallas_call(
        bn_stats_kernel,
        out_shape=(jax.ShapeDtypeStruct((NC, 1), jnp.float32),
                   jax.ShapeDtypeStruct((NC, 1), jnp.float32)),
        grid=(NC // tr, HW // tc),
        in_specs=[pl.BlockSpec((tr, tc), lambda i, j: (i, j))],
        out_specs=(pl.BlockSpec((tr, 1), lambda i, j: (i, 0)),
                   pl.BlockSpec((tr, 1), lambda i, j: (i, 0))),
        compiler_params=pltpu.CompilerParams(
            dimension_semantics=("parallel", "arbitrary"),
            vmem_limit_bytes=vmem_limit),
    )(xr)

    # fold BN affine into per-channel scale / shift (tiny O(C) glue in XLA)
    # TODO(synk): E[x^2]-E[x]^2 in f32 is cancellation-prone for inputs with
    # very large |mean|/std; a centered two-pass variance would be safer there.
    cnt = jnp.float32(N * H * W)
    ch_sum = jnp.sum(row_sum.reshape(N, Cin), axis=0)
    ch_sq = jnp.sum(row_sq.reshape(N, Cin), axis=0)
    mean = ch_sum / cnt
    var = jnp.maximum(ch_sq / cnt - mean * mean, 0.0)      # biased variance
    scale_v = gamma.astype(jnp.float32) / jnp.sqrt(var + eps)
    shift_v = beta.astype(jnp.float32) - mean * scale_v
    scale = scale_v.reshape(Cin, 1)
    shift = shift_v.reshape(Cin, 1)

    # ----------------- kernel 2: fused BN + ReLU + 3x3 conv ----------------
    msize = jnp.dtype(mxu_dtype).itemsize

    def vmem_use(th_):
        L_ = (th_ + 2) * W + 2
        thW_ = th_ * W
        return (2 * Cin * L_ * 4            # window (double-buffered, f32)
                + Cin * L_ * msize          # activation
                + 9 * Cin * thW_ * msize    # stacked patch matrix
                + 2 * Cout * thW_ * 4       # output block (Pallas double-buffers)
                + Cout * 9 * Cin * msize + 2 * Cin * 4)

    if row_block is None:
        cands = [d for d in range(1, H + 1)
                 if H % d == 0 and ((d * W) % 128 == 0 or d == H)]
        fits = [d for d in cands if vmem_use(d) <= vmem_limit // 2]
        row_block = max(fits) if fits else min(cands)
    th = int(row_block)
    assert H % th == 0, "row_block must divide H"
    thW = th * W
    assert thW % 128 == 0 or th == H, \
        "row_block*W must be a multiple of 128 (or row_block == H)"
    Hb = H // th
    L = (th + 2) * W + 2

    x_flat = x_nchw.reshape(N, Cin, HW)              # free reshape of NCHW
    w_flat = jnp.transpose(weight_oihw, (0, 2, 3, 1)).reshape(Cout, 9 * Cin)
    w_flat = w_flat.astype(mxu_dtype)

    kernel = _make_fused_kernel(Cin, W, th, Hb)

    out = pl.pallas_call(
        kernel,
        out_shape=jax.ShapeDtypeStruct((N, Cout, HW), jnp.float32),
        grid=(N, Hb),
        in_specs=[
            pl.BlockSpec((Cin, 1), lambda n, i: (0, 0)),           # BN scale
            pl.BlockSpec((Cin, 1), lambda n, i: (0, 0)),           # BN shift
            pl.BlockSpec((Cout, 9 * Cin), lambda n, i: (0, 0)),    # folded taps
            pl.BlockSpec(memory_space=pl.ANY),                     # raw input (HBM)
        ],
        out_specs=pl.BlockSpec((1, Cout, thW), lambda n, i: (n, 0, i)),
        scratch_shapes=[
            pltpu.VMEM((2, Cin, L), jnp.float32),    # double-buffered window
            pltpu.VMEM((Cin, L), mxu_dtype),         # BN+ReLU activation
            pltpu.VMEM((9 * Cin, thW), mxu_dtype),   # stacked im2col patches
            pltpu.SemaphoreType.DMA((2, 3)),         # per slot: main/top/bot
        ],
        compiler_params=pltpu.CompilerParams(
            dimension_semantics=("parallel", "arbitrary"),
            vmem_limit_bytes=vmem_limit),
    )(scale, shift, w_flat, x_flat)

    return out.reshape(N, Cout, H, W)                # free reshape, no transpose


# ------------------------------- reference ---------------------------------
def reference_forward(x_nchw, weight_oihw, gamma, beta, eps=1e-5):
    mean = jnp.mean(x_nchw, axis=(0, 2, 3), keepdims=True)
    var = jnp.mean((x_nchw - mean) ** 2, axis=(0, 2, 3), keepdims=True)
    g = gamma.reshape(1, -1, 1, 1)
    b = beta.reshape(1, -1, 1, 1)
    a = jnp.maximum((x_nchw - mean) / jnp.sqrt(var + eps) * g + b, 0.0)
    return lax.conv_general_dilated(
        a, weight_oihw, window_strides=(1, 1), padding=((1, 1), (1, 1)),
        dimension_numbers=("NCHW", "OIHW", "NCHW"))


# --------------------------------- main -------------------------------------
if __name__ == "__main__":
    key = jax.random.PRNGKey(0)
    kx, kw, kg, kb = jax.random.split(key, 4)

    N, Cin, H, W = 2, 4, 16, 16
    Cout = 8      # BasicConv(4, 8, kernel_size=3, stride=1, padding=1)

    x = jax.random.normal(kx, (N, Cin, H, W), dtype=jnp.float32)
    weight = jax.random.normal(kw, (Cout, Cin, 3, 3), dtype=jnp.float32) * 0.1
    gamma = 1.0 + 0.1 * jax.random.normal(kg, (Cin,), dtype=jnp.float32)
    beta = 0.1 * jax.random.normal(kb, (Cin,), dtype=jnp.float32)

    ref = jax.block_until_ready(reference_forward(x, weight, gamma, beta))

    # Exact (f32-operand) path; row_block=8 gives two row blocks per image so
    # the halo DMAs, pad-row masking and cross-step prefetch are exercised.
    out32 = jax.block_until_ready(
        basic_conv_forward(x, weight, gamma, beta,
                           row_block=8, mxu_dtype=jnp.float32))
    assert out32.shape == (N, Cout, H, W)
    assert jnp.allclose(out32, ref, atol=1e-4, rtol=1e-4), "f32 path mismatch"

    # Default path: bf16 MXU operands (f32 accumulation) + automatic tiling.
    outbf = jax.block_until_ready(basic_conv_forward(x, weight, gamma, beta))
    assert outbf.shape == (N, Cout, H, W)
    assert jnp.allclose(outbf, ref, atol=5e-2, rtol=5e-2), "bf16 path mismatch"

    print("KERNEL_OK")
</pallas_src>

<mosaic_0001>
module attributes {stable_mosaic.version = 11 : i64} {
  func.func @bn_stats_kernel(%arg0: i32, %arg1: i32, %arg2: memref<8x256xf32, #tpu.memory_space<vmem>>, %arg3: memref<8x1xf32, #tpu.memory_space<vmem>>, %arg4: memref<8x1xf32, #tpu.memory_space<vmem>>) attributes {dimension_semantics = [#tpu.dimension_semantics<parallel>, #tpu.dimension_semantics<arbitrary>], iteration_bounds = array<i64: 1, 1>, scalar_prefetch = 0 : i64, scratch_operands = 0 : i64, tpu.core_type = #tpu.core_type<tc>, window_params = [{transform_indices = @transform_0, window_bounds = array<i64: 8, 256>}, {transform_indices = @transform_1, window_bounds = array<i64: 8, 1>}, {transform_indices = @transform_2, window_bounds = array<i64: 8, 1>}]} {
    %c0_i32 = arith.constant 0 : i32
    %0 = arith.cmpi eq, %arg1, %c0_i32 : i32
    %1 = arith.extui %0 : i1 to i32
    %c0_i32_0 = arith.constant 0 : i32
    %2 = arith.cmpi ne, %1, %c0_i32_0 : i32
    scf.if %2 {
      %cst_11 = arith.constant 0.000000e+00 : f32
      %15 = vector.broadcast %cst_11 : f32 to vector<8x1xf32>
      %c0_12 = arith.constant 0 : index
      %c0_13 = arith.constant 0 : index
      %16 = vector.load %arg3[%c0_12, %c0_13] : memref<8x1xf32, #tpu.memory_space<vmem>>, vector<8x1xf32>
      tpu.vector_store %arg3[%c0_12, %c0_13], %15 {strides = array<i32>} : memref<8x1xf32, #tpu.memory_space<vmem>>, vector<8x1xf32>,
      %cst_14 = arith.constant 0.000000e+00 : f32
      %17 = vector.broadcast %cst_14 : f32 to vector<8x1xf32>
      %c0_15 = arith.constant 0 : index
      %c0_16 = arith.constant 0 : index
      %18 = vector.load %arg4[%c0_15, %c0_16] : memref<8x1xf32, #tpu.memory_space<vmem>>, vector<8x1xf32>
      tpu.vector_store %arg4[%c0_15, %c0_16], %17 {strides = array<i32>} : memref<8x1xf32, #tpu.memory_space<vmem>>, vector<8x1xf32>,
    } else {
    }
    %c0 = arith.constant 0 : index
    %c0_1 = arith.constant 0 : index
    %3 = vector.load %arg2[%c0, %c0_1] : memref<8x256xf32, #tpu.memory_space<vmem>>, vector<8x256xf32>
    %c0_2 = arith.constant 0 : index
    %c0_3 = arith.constant 0 : index
    %4 = vector.load %arg3[%c0_2, %c0_3] : memref<8x1xf32, #tpu.memory_space<vmem>>, vector<8x1xf32>
    %cst = arith.constant dense<0.000000e+00> : vector<8xf32>
    %5 = vector.multi_reduction <add>, %3, %cst [1] : vector<8x256xf32> to vector<8xf32>
    %6 = vector.shape_cast %5 : vector<8xf32> to vector<8x1xf32>
    %7 = arith.addf %4, %6 : vector<8x1xf32>
    %c0_4 = arith.constant 0 : index
    %c0_5 = arith.constant 0 : index
    %8 = vector.load %arg3[%c0_4, %c0_5] : memref<8x1xf32, #tpu.memory_space<vmem>>, vector<8x1xf32>
    tpu.vector_store %arg3[%c0_4, %c0_5], %7 {strides = array<i32>} : memref<8x1xf32, #tpu.memory_space<vmem>>, vector<8x1xf32>,
    %c0_6 = arith.constant 0 : index
    %c0_7 = arith.constant 0 : index
    %9 = vector.load %arg4[%c0_6, %c0_7] : memref<8x1xf32, #tpu.memory_space<vmem>>, vector<8x1xf32>
    %10 = arith.mulf %3, %3 : vector<8x256xf32>
    %cst_8 = arith.constant dense<0.000000e+00> : vector<8xf32>
    %11 = vector.multi_reduction <add>, %10, %cst_8 [1] : vector<8x256xf32> to vector<8xf32>
    %12 = vector.shape_cast %11 : vector<8xf32> to vector<8x1xf32>
    %13 = arith.addf %9, %12 : vector<8x1xf32>
    %c0_9 = arith.constant 0 : index
    %c0_10 = arith.constant 0 : index
    %14 = vector.load %arg4[%c0_9, %c0_10] : memref<8x1xf32, #tpu.memory_space<vmem>>, vector<8x1xf32>
    tpu.vector_store %arg4[%c0_9, %c0_10], %13 {strides = array<i32>} : memref<8x1xf32, #tpu.memory_space<vmem>>, vector<8x1xf32>,
    return
  }
  func.func @transform_0(%arg0: i32, %arg1: i32) -> (i32, i32) {
    %c0_i32 = arith.constant 0 : i32
    return %arg0, %arg1 : i32, i32
  }
  func.func @transform_1(%arg0: i32, %arg1: i32) -> (i32, i32) {
    %c0_i32 = arith.constant 0 : i32
    %c0_i32_0 = arith.constant 0 : i32
    return %arg0, %c0_i32 : i32, i32
  }
  func.func @transform_2(%arg0: i32, %arg1: i32) -> (i32, i32) {
    %c0_i32 = arith.constant 0 : i32
    %c0_i32_0 = arith.constant 0 : i32
    return %arg0, %c0_i32 : i32, i32
  }
}

</mosaic_0001>

<llo_original>
// kernel: tpu_custom_call.1
$region0: #{tpu_custom_call.1}
  #allocation0 [shape = 'u32[]', space=smem, size = 0x4, offset = 0x4, fixed_abs, tag = 'smem constant byte address 0x4 - core index']
  #allocation1 [shape = 'u32[144,128]{1,0:T(1,128)}', space=vmem, size = 0x12000, scoped, tag = 'internal scratch']
  %s0 = inlined_call_operand.hbm [shape: f32[8,256], index: 0, kind: input, shape index: {}]
  %s1 = inlined_call_operand.vmem [shape: f32[8,1], index: 1, kind: output, shape index: {0}]
  %s2 = inlined_call_operand.vmem [shape: f32[8,1], index: 2, kind: output, shape index: {1}]
  %3 = xla_tuple %s1, %s2
  %s4 = sld [smem:[#allocation0]]
  $region30: #{tpu_custom_call.1} parent=0
    _
  %s6 = ssub.s32 1, %s4
  %s7 = scalar_select 0, %s6, %s4
  $region1: #{tpu_custom_call.1} parent=0
    #allocation2 [shape = 'u8[8192]{0}', space=vmem, size = 0x2000, scoped, tag = 'input window, operand 0, single buffered']
    #allocation3 [shape = 's32[1]{0}', space=sflag, size = 0x4, scoped, tag = 'scoped memory for tpu_custom_call.1']
    %8 = vsyncpa [#allocation3], 0
    // Predicated region
    $region2: #{tpu_custom_call.1} parent=1 // pred_check
      _
    $region3: #{tpu_custom_call.1} parent=1 // pred_check_branch
      %10 = sbr.rel (0) target = $region5
    $region4: #{tpu_custom_call.1} parent=1 // pred_region
      %s12 = ssub.s32 256, 256
      %13 = vsyncadd [#allocation3], %s12
      %s15 = sshll.u32 [#allocation2], 4
      %s16 = int_to_ptr.vmem [resolvable:$true] %s15
      %18 = dma.hbm_to_vmem [thread:$0]  %s0, 256, %s16, [#allocation3]
    $region5: #{tpu_custom_call.1} parent=1 // pred_fallthru
      _
    // Predicated region
    $region6: #{tpu_custom_call.1} parent=1 // pred_check
      _
    $region7: #{tpu_custom_call.1} parent=1 // pred_check_branch
      %20 = sbr.rel (0) target = $region9
    $region8: #{tpu_custom_call.1} parent=1 // pred_region
      %21 = dma.done [#allocation3], 256
    $region9: #{tpu_custom_call.1} parent=1 // pred_fallthru
      _
    %p22 = scmp.eq.s32.totalorder 0, 0
    // Predicated region
    $region10: #{tpu_custom_call.1} parent=1 // pred_check
      %p23 = pneg %p22
    $region11: #{tpu_custom_call.1} parent=1 // pred_check_branch
      %25 = sbr.rel (%p23) target = $region13
    $region12: #{tpu_custom_call.1} parent=1 // pred_region
      %vm26 = vcmask 7168
      %27 = vst.msk [vmem:[%s1] sm:$0xff] %vm26, 0.0
      %28 = vst.msk [vmem:[%s2] sm:$0xff] %vm26, 0.0
    $region13: #{tpu_custom_call.1} parent=1 // pred_fallthru
      _
    %v29 = vld [vmem:[#allocation2] sm:$0xff]
    %v30 = vld [vmem:[#allocation2 + $0x8] sm:$0xff]
    %v31 = vld [vmem:[%s1] sm:$0xff]
    %v32 = vadd.f32 %v29, %v30
    %33 = vadd.xlane.f32.xlu0 %v32
    %v34 = vpop.xlane.xlu0 %33
    %v35 = vadd.f32 %v31, %v34
    %vm36 = vcmask 7168
    %37 = vst.msk [vmem:[%s1] sm:$0xff] %vm36, %v35
    %v38 = vld [vmem:[%s2] sm:$0xff]
    %v39 = vmul.f32 %v29, %v29
    %v40 = vmul.f32 %v30, %v30
    %v41 = vadd.f32 %v39, %v40
    %42 = vadd.xlane.f32.xlu0 %v41
    %v43 = vpop.xlane.xlu0 %42
    %v44 = vadd.f32 %v38, %v43
    %45 = vst.msk [vmem:[%s2] sm:$0xff] %vm36, %v44
    // Predicated region
    $region14: #{tpu_custom_call.1} parent=1 // pred_check
      _
    $region15: #{tpu_custom_call.1} parent=1 // pred_check_branch
      %47 = sbr.rel (0) target = $region17
    $region16: #{tpu_custom_call.1} parent=1 // pred_region
      _
    $region17: #{tpu_custom_call.1} parent=1 // pred_fallthru
      _
    // Predicated region
    $region18: #{tpu_custom_call.1} parent=1 // pred_check
      _
    $region19: #{tpu_custom_call.1} parent=1 // pred_check_branch
      %49 = sbr.rel (0) target = $region21
    $region20: #{tpu_custom_call.1} parent=1 // pred_region
      _
    $region21: #{tpu_custom_call.1} parent=1 // pred_fallthru
      _
    // Predicated region
    $region22: #{tpu_custom_call.1} parent=1 // pred_check
      _
    $region23: #{tpu_custom_call.1} parent=1 // pred_check_branch
      %51 = sbr.rel (0) target = $region25
    $region24: #{tpu_custom_call.1} parent=1 // pred_region
      _
    $region25: #{tpu_custom_call.1} parent=1 // pred_fallthru
      _
    // Predicated region
    $region26: #{tpu_custom_call.1} parent=1 // pred_check
      _
    $region27: #{tpu_custom_call.1} parent=1 // pred_check_branch
      %53 = sbr.rel (0) target = $region29
    $region28: #{tpu_custom_call.1} parent=1 // pred_region
      _
    $region29: #{tpu_custom_call.1} parent=1 // pred_fallthru
      _
    %54 = vsyncpa [#allocation3], 1

</llo_original>
